<compile_context>
chip_gen: v7x
topology: tpu7x:2x2x1
jax: 0.10.0
libtpu: 0.0.40
codegen_flags: <defaults>
</compile_context>

<pallas_src>
import jax
import jax.numpy as jnp
from jax.experimental import pallas as pl
from jax.experimental.pallas import tpu as pltpu

LANE = 128                           # TPU lane width (MXU operand padding)
_VMEM_BUDGET = 12 * 1024 * 1024      # tile-sizing budget (under v5e's ~16 MiB default)
_VMEM_LIMIT = 20 * 1024 * 1024       # explicit scoped-VMEM request (all generations)


def _affine_head_kernel(x_ref, w_ref, b_ref, o_ref):
    """One batch tile of the collapsed network: o = (x @ W_pad)[:, :1] + b.

    x_ref: (tb, D)   native x dtype (cast to weight dtype in-kernel)
    w_ref: (D, 128)  compute dtype -- collapsed weights in lane 0, zeros elsewhere
    b_ref: (1, 1)    float32 SMEM scalar -- collapsed bias
    o_ref: (tb, 1)   float32 compact output
    """
    x = x_ref[...].astype(w_ref.dtype)
    acc = jnp.dot(x, w_ref[...], preferred_element_type=jnp.float32)
    o_ref[...] = (acc[:, 0:1] + b_ref[0, 0]).astype(o_ref.dtype)


def init_params(key, input_size, dtype=jnp.float32):
    """nn.Linear-style init. Weights pre-transposed to [in,out]; biases [1,out]."""
    dims = [(input_size, 1024), (1024, 128), (128, 64), (64, 16), (16, 1)]
    params = []
    for fan_in, fan_out in dims:
        key, kw, kb = jax.random.split(key, 3)
        bound = 1.0 / (fan_in ** 0.5)
        w = jax.random.uniform(kw, (fan_in, fan_out), dtype, -bound, bound)
        b = jax.random.uniform(kb, (1, fan_out), dtype, -bound, bound)
        params.append((w, b))
    return params


def collapse_affine(params):
    """Fold the 5 Linear layers (Dropout == identity in eval) into one affine map."""
    w_all, b_all = params[0]
    w_all = w_all.astype(jnp.float32)
    b_all = b_all.astype(jnp.float32)
    for w_i, b_i in params[1:]:
        w_i = w_i.astype(jnp.float32)
        w_all = w_all @ w_i                              # [D, out_i]
        b_all = b_all @ w_i + b_i.astype(jnp.float32)    # [1, out_i]
    return w_all, b_all                                  # [D, 1], [1, 1]


def _round_up(n, m):
    return ((n + m - 1) // m) * m


def _vmem_estimate_bytes(tb, d, x_dtype, compute_dtype):
    x_itm = jnp.dtype(x_dtype).itemsize
    w_itm = jnp.dtype(compute_dtype).itemsize
    x_bufs = 2 * tb * d * x_itm          # double-buffered x tile
    o_bufs = 2 * tb * LANE * 4           # (tb,1) f32 output tile, lane-padded in VMEM
    w_bufs = 2 * d * LANE * w_itm        # grid-invariant weight block (2 buffers)
    return x_bufs + o_bufs + w_bufs


def aesthetic_predictor(x, params, *, tb=None, compute_dtype=jnp.bfloat16,
                        training=False):
    """Eval-mode forward of AestheticPredictor.  x: [B, D] -> [B, 1] float32."""
    if training:
        # TODO(synk): stochastic dropout path not implemented.
        raise NotImplementedError("only the eval-mode (dropout == identity) "
                                  "forward is implemented")
    B, D = x.shape

    # Collapse the affine chain once (tiny, f32); pad the [D,1] weight to 128
    # lanes (answer in lane 0) so the MXU sees a full-lane operand.
    w_all, b_all = collapse_affine(params)                  # [D,1], [1,1] f32
    w_pad = jnp.zeros((D, LANE), jnp.float32).at[:, :1].set(w_all)
    w_pad = w_pad.astype(compute_dtype)
    b_scalar = b_all.reshape(1, 1).astype(jnp.float32)      # SMEM scalar

    # Batch tile: large (amortize ~0.35 us/step), but >= 4 grid steps when the
    # batch allows (v7x dual-TC sharding), and within the VMEM budget.
    if tb is None:
        if B >= 4096:
            tb = 2048
        elif B >= 1024:
            tb = 1024
        else:
            tb = _round_up(max(B, 1), 8)
        if B >= 32:
            tb = min(tb, max(8, _round_up(pl.cdiv(B, 4), 8)))
    tb = max(8, _round_up(tb, 8))
    while tb > 8 and _vmem_estimate_bytes(tb, D, x.dtype, compute_dtype) > _VMEM_BUDGET:
        tb //= 2
    tb = max(8, _round_up(tb, 8))

    grid = pl.cdiv(B, tb)    # ragged last block is masked by Pallas; no jnp.pad

    grid_spec = pltpu.PrefetchScalarGridSpec(
        num_scalar_prefetch=0,
        grid=(grid,),
        in_specs=[
            pl.BlockSpec((tb, D), lambda i: (i, 0)),             # x batch tile
            pl.BlockSpec((D, LANE), lambda i: (0, 0)),           # collapsed weights
            pl.BlockSpec(memory_space=pltpu.MemorySpace.SMEM),   # bias scalar
        ],
        out_specs=pl.BlockSpec((tb, 1), lambda i: (i, 0)),       # compact output
    )

    x_itm = jnp.dtype(x.dtype).itemsize
    w_itm = jnp.dtype(compute_dtype).itemsize
    cost = pl.CostEstimate(
        flops=2 * B * D * LANE,
        transcendentals=0,
        bytes_accessed=B * D * x_itm + D * LANE * w_itm + B * 4 + 4,
    )

    return pl.pallas_call(
        _affine_head_kernel,
        out_shape=jax.ShapeDtypeStruct((B, 1), jnp.float32),
        grid_spec=grid_spec,
        compiler_params=pltpu.CompilerParams(
            dimension_semantics=("parallel",),
            vmem_limit_bytes=_VMEM_LIMIT),
        cost_estimate=cost,
    )(x, w_pad, b_scalar)


def reference_forward(x, params):
    """Pure-JAX layered reference (eval-mode forward; Dropout == identity)."""
    h = x.astype(jnp.float32)
    for w, b in params:
        h = h @ w.astype(jnp.float32) + b.astype(jnp.float32)
    return h


if __name__ == "__main__":
    INPUT_SIZE = 64
    BATCH = 200   # deliberately not a tile multiple -> exercises ragged last block

    key = jax.random.PRNGKey(0)
    key, kx = jax.random.split(key)
    # Embeddings typically arrive in bf16 in a real pipeline; generate them
    # that way so the kernel's x stream is genuinely half-width.
    x = jax.random.normal(kx, (BATCH, INPUT_SIZE), jnp.float32).astype(jnp.bfloat16)

    params = init_params(key, INPUT_SIZE)
    ref = reference_forward(x, params)

    # bf16 fast path (default): collapsed weights rounded to bf16.
    out_bf16 = jax.block_until_ready(aesthetic_predictor(x, params))
    assert out_bf16.shape == (BATCH, 1), out_bf16.shape
    err_bf16 = float(jnp.max(jnp.abs(out_bf16 - ref)))
    assert err_bf16 < 2e-2, f"bf16 path mismatch: max err {err_bf16}"

    # f32 path: matches the layered eval-mode PyTorch forward tightly.
    out_f32 = jax.block_until_ready(
        aesthetic_predictor(x, params, compute_dtype=jnp.float32))
    err_f32 = float(jnp.max(jnp.abs(out_f32 - ref)))
    assert err_f32 < 1e-3, f"f32 path mismatch: max err {err_f32}"

    print("KERNEL_OK")
</pallas_src>

<mosaic_0001>
module attributes {stable_mosaic.version = 11 : i64} {
  func.func @_affine_head_kernel(%arg0: i32, %arg1: memref<56x64xbf16, #tpu.memory_space<vmem>>, %arg2: memref<64x128xbf16, #tpu.memory_space<vmem>>, %arg3: memref<1x1xf32, #tpu.memory_space<smem>>, %arg4: memref<56x1xf32, #tpu.memory_space<vmem>>) attributes {dimension_semantics = [#tpu.dimension_semantics<parallel>], iteration_bounds = array<i64: 4>, scalar_prefetch = 0 : i64, scratch_operands = 0 : i64, tpu.core_type = #tpu.core_type<tc>, window_params = [{transform_indices = @transform_0, window_bounds = array<i64: 56, 64>}, {pipeline_mode = #tpu.pipeline_mode<synchronous>, transform_indices = @transform_1, window_bounds = array<i64: 64, 128>}, {transform_indices = @transform_2, window_bounds = array<i64: 1, 1>}, {transform_indices = @transform_3, window_bounds = array<i64: 56, 1>}]} {
    %c0 = arith.constant 0 : index
    %c0_0 = arith.constant 0 : index
    %0 = vector.load %arg1[%c0, %c0_0] : memref<56x64xbf16, #tpu.memory_space<vmem>>, vector<56x64xbf16>
    %c0_1 = arith.constant 0 : index
    %c0_2 = arith.constant 0 : index
    %1 = vector.load %arg2[%c0_1, %c0_2] : memref<64x128xbf16, #tpu.memory_space<vmem>>, vector<64x128xbf16>
    %cst = arith.constant dense<0.000000e+00> : vector<56x128xf32>
    %2 = tpu.matmul %0, %1, %cst {dimension_numbers = #tpu.dot_dimension_numbers<[1], [0], [0], [1], [0, 0, 1, 1], [], []>} : vector<56x64xbf16>, vector<64x128xbf16>, vector<56x128xf32> -> vector<56x128xf32>
    %3 = vector.extract_strided_slice %2 {offsets = [0, 0], sizes = [56, 1], strides = [1, 1]} : vector<56x128xf32> to vector<56x1xf32>
    %c0_3 = arith.constant 0 : index
    %c0_4 = arith.constant 0 : index
    %4 = memref.load %arg3[%c0_3, %c0_4] : memref<1x1xf32, #tpu.memory_space<smem>>
    %5 = vector.broadcast %4 : f32 to vector<56x1xf32>
    %6 = arith.addf %3, %5 : vector<56x1xf32>
    %c0_5 = arith.constant 0 : index
    %c0_6 = arith.constant 0 : index
    %7 = vector.load %arg4[%c0_5, %c0_6] : memref<56x1xf32, #tpu.memory_space<vmem>>, vector<56x1xf32>
    tpu.vector_store %arg4[%c0_5, %c0_6], %6 {strides = array<i32>} : memref<56x1xf32, #tpu.memory_space<vmem>>, vector<56x1xf32>,
    return
  }
  func.func @transform_0(%arg0: i32) -> (i32, i32) {
    %c0_i32 = arith.constant 0 : i32
    %c0_i32_0 = arith.constant 0 : i32
    return %arg0, %c0_i32 : i32, i32
  }
  func.func @transform_1(%arg0: i32) -> (i32, i32) {
    %c0_i32 = arith.constant 0 : i32
    %c0_i32_0 = arith.constant 0 : i32
    %c0_i32_1 = arith.constant 0 : i32
    return %c0_i32, %c0_i32_0 : i32, i32
  }
  func.func @transform_2(%arg0: i32) -> (i32, i32) {
    %c0_i32 = arith.constant 0 : i32
    %c0_i32_0 = arith.constant 0 : i32
    %c0_i32_1 = arith.constant 0 : i32
    return %c0_i32, %c0_i32_0 : i32, i32
  }
  func.func @transform_3(%arg0: i32) -> (i32, i32) {
    %c0_i32 = arith.constant 0 : i32
    %c0_i32_0 = arith.constant 0 : i32
    return %arg0, %c0_i32 : i32, i32
  }
}

</mosaic_0001>

<llo_original>
// kernel: tpu_custom_call.1
$region0: #{tpu_custom_call.1}
  #allocation0 [shape = 'u32[]', space=smem, size = 0x4, offset = 0x4, fixed_abs, tag = 'smem constant byte address 0x4 - core index']
  #allocation1 [shape = 'u32[144,128]{1,0:T(1,128)}', space=vmem, size = 0x12000, scoped, tag = 'internal scratch']
  #allocation2 [shape = 'f32[1,1]{1,0:T(1,128)S(6)}', space=smem, size = 0x200, scoped, tag = 'scoped memory for tpu_custom_call.1']
  %s0 = inlined_call_operand.vmem [shape: bf16[200,64], index: 0, kind: input, shape index: {}]
  %s1 = inlined_call_operand.vmem [shape: bf16[64,128], index: 1, kind: input, shape index: {}]
  %s2 = inlined_call_operand.<no memory space> [shape: f32[1,1], index: 2, kind: input, shape index: {}]
  %s3 = inlined_call_operand.vmem [shape: f32[200,1], index: 3, kind: output, shape index: {}]
  %s4 = sld [smem:[#allocation0]]
  $region93: #{tpu_custom_call.1} parent=0
    _
  %s6 = ssub.s32 1, %s4
  %s7 = scalar_select 0, %s6, %s4
  %8 = sst [smem:[#allocation2]] %s2
  $region1: #{tpu_custom_call.1} parent=0
    #allocation3 [shape = 'u8[57344]{0}', space=vmem, size = 0xe000, scoped, tag = 'output window, operand 0']
    loop: start=0, step=1, limit=6
    $region2: #{tpu_custom_call.1} parent=1 // loop_pre_header
      _
    $region3: #{tpu_custom_call.1} parent=1 // loop_header
      %s10 = sphi 0, %s14
      %p11 = scmp.ge.s32.totalorder %s10, 6
      %s20 = sphi 0, %s22
      %s23 = sphi 0, %s20
      %s24 = sphi 0, %s23
      %s40 = sphi 0, %s24
      %s44 = sphi 0, %s44
      %s46 = sphi 0, %s44
      %s47 = sphi 0, %s46
      %s61 = sphi 0, %s47
      %s65 = sphi 0, %s65
      %s67 = sphi 0, %s65
      %s68 = sphi 0, %s67
      %s82 = sphi 0, %s68
      %s88 = sphi 0, %s90
      %s91 = sphi 0, %s88
      %s92 = sphi 0, %s91
      %s108 = sphi 0, %s92
    $region4: #{tpu_custom_call.1} parent=1 // loop_header_branch
      %13 = sbr.rel (%p11) target = $region8
    $region5: #{tpu_custom_call.1} parent=1 // loop_body
      %s15 = ssub.s32 %s10, 1
      %s16 = ssub.s32 %s10, 2
      %s17 = sadd.s32 %s10, 1
      %s18 = ssub.s32 %s10, %s17
      %p19 = scmp.eq.s32.totalorder %s18, 0
      %s21 = sadd.s32 %s20, 1
      %s22 = scalar_select %p19, %s20, %s21
      %p25 = pneg %p19
      %p26 = scmp.eq.s32.totalorder %s10, 3
      %p27 = por %p25, %p26
      %p28 = scmp.ne.s32.totalorder %s20, %s23
      %p29 = scmp.eq.s32.totalorder %s10, 0
      %p30 = por %p28, %p29
      %p31 = scmp.ne.s32.totalorder %s20, %s23
      %p32 = scmp.eq.s32.totalorder %s15, 3
      %p33 = por %p31, %p32
      %p34 = scmp.ne.s32.totalorder %s23, %s24
      %p35 = scmp.eq.s32.totalorder %s15, 0
      %p36 = por %p34, %p35
      %p37 = scmp.ne.s32.totalorder %s23, %s24
      %p38 = scmp.eq.s32.totalorder %s16, 3
      %p39 = por %p37, %p38
      %p41 = scmp.ne.s32.totalorder %s24, %s40
      %p42 = scmp.eq.s32.totalorder %s16, 0
      %p43 = por %p41, %p42
      %s45 = sadd.s32 %s44, 1
      %p48 = scmp.eq.s32.totalorder %s10, 3
      %p49 = scmp.ne.s32.totalorder %s44, %s46
      %p50 = scmp.eq.s32.totalorder %s10, 0
      %p51 = por %p49, %p50
      %p52 = scmp.ne.s32.totalorder %s44, %s46
      %p53 = scmp.eq.s32.totalorder %s15, 3
      %p54 = por %p52, %p53
      %p55 = scmp.ne.s32.totalorder %s46, %s47
      %p56 = scmp.eq.s32.totalorder %s15, 0
      %p57 = por %p55, %p56
      %p58 = scmp.ne.s32.totalorder %s46, %s47
      %p59 = scmp.eq.s32.totalorder %s16, 3
      %p60 = por %p58, %p59
      %p62 = scmp.ne.s32.totalorder %s47, %s61
      %p63 = scmp.eq.s32.totalorder %s16, 0
      %p64 = por %p62, %p63
      %s66 = sadd.s32 %s65, 1
      %p69 = scmp.eq.s32.totalorder %s10, 3
      %p70 = scmp.ne.s32.totalorder %s65, %s67
      %p71 = scmp.eq.s32.totalorder %s10, 0
      %p72 = por %p70, %p71
      %p73 = scmp.ne.s32.totalorder %s65, %s67
      %p74 = scmp.eq.s32.totalorder %s15, 3
      %p75 = por %p73, %p74
      %p76 = scmp.ne.s32.totalorder %s67, %s68
      %p77 = scmp.eq.s32.totalorder %s15, 0
      %p78 = por %p76, %p77
      %p79 = scmp.ne.s32.totalorder %s67, %s68
      %p80 = scmp.eq.s32.totalorder %s16, 3
      %p81 = por %p79, %p80
      %p83 = scmp.ne.s32.totalorder %s68, %s82
      %p84 = scmp.eq.s32.totalorder %s16, 0
      %p85 = por %p83, %p84
      %s86 = ssub.s32 %s10, %s17
      %p87 = scmp.eq.s32.totalorder %s86, 0
      %s89 = sadd.s32 %s88, 1
      %s90 = scalar_select %p87, %s88, %s89
      %p93 = pneg %p87
      %p94 = scmp.eq.s32.totalorder %s10, 3
      %p95 = por %p93, %p94
      %p96 = scmp.ne.s32.totalorder %s88, %s91
      %p97 = scmp.eq.s32.totalorder %s10, 0
      %p98 = por %p96, %p97
      %p99 = scmp.ne.s32.totalorder %s88, %s91
      %p100 = scmp.eq.s32.totalorder %s15, 3
      %p101 = por %p99, %p100
      %p102 = scmp.ne.s32.totalorder %s91, %s92
      %p103 = scmp.eq.s32.totalorder %s15, 0
      %p104 = por %p102, %p103
      %p105 = scmp.ne.s32.totalorder %s91, %s92
      %p106 = scmp.eq.s32.totalorder %s16, 3
      %p107 = por %p105, %p106
      %p109 = scmp.ne.s32.totalorder %s92, %s108
      %p110 = scmp.eq.s32.totalorder %s16, 0
      %p111 = por %p109, %p110
      %p112 = scmp.le.s32.totalorder 1, %s10
      %p113 = scmp.lt.s32.totalorder %s10, 5
      %p114 = pnand %p112, %p113
      %p115 = pneg %p114
      // Predicated region
      $region9: #{tpu_custom_call.1} parent=5 // pred_check
        _
      $region10: #{tpu_custom_call.1} parent=5 // pred_check_branch
        %117 = sbr.rel (%p114) target = $region12
      $region11: #{tpu_custom_call.1} parent=5 // pred_region
        %s118 = ssub.s32 %s10, 1
        // Predicated region
        $region13: #{tpu_custom_call.1} parent=11 // pred_check
          %p119 = pneg %p57
        $region14: #{tpu_custom_call.1} parent=11 // pred_check_branch
          %121 = sbr.rel (%p119) target = $region16
        $region15: #{tpu_custom_call.1} parent=11 // pred_region
          _
        $region16: #{tpu_custom_call.1} parent=11 // pred_fallthru
          _
        // Predicated region
        $region17: #{tpu_custom_call.1} parent=11 // pred_check
          %p122 = pneg %p78
        $region18: #{tpu_custom_call.1} parent=11 // pred_check_branch
          %124 = sbr.rel (%p122) target = $region20
        $region19: #{tpu_custom_call.1} parent=11 // pred_region
          _
        $region20: #{tpu_custom_call.1} parent=11 // pred_fallthru
          _
      $region12: #{tpu_custom_call.1} parent=5 // pred_fallthru
        _
      %p125 = scmp.lt.s32.totalorder %s10, 4
      // Predicated region
      $region21: #{tpu_custom_call.1} parent=5 // pred_check
        %p126 = pneg %p125
      $region22: #{tpu_custom_call.1} parent=5 // pred_check_branch
        %128 = sbr.rel (%p126) target = $region24
      $region23: #{tpu_custom_call.1} parent=5 // pred_region
        // Predicated region
        $region25: #{tpu_custom_call.1} parent=23 // pred_check
          %p129 = pneg %p30
        $region26: #{tpu_custom_call.1} parent=23 // pred_check_branch
          %131 = sbr.rel (%p129) target = $region28
        $region27: #{tpu_custom_call.1} parent=23 // pred_region
          %s132 = smul.u32 7, %s10
          %s133 = ssub.s32 25, %s132
          %p134 = scmp.lt.s32.totalorder %s133, 7
          %s135 = scalar_select %p134, %s133, 7
          %s136 = smul.u32 64, %s135
          %p137 = scmp.lt.s32.totalorder %s132, 24
          %s138 = scalar_select %p137, %s132, 24
          %s139 = smul.addr %s138, 4
          %s140 = scalar_lea.vmem %s0, %s139
          %s141 = smul.u32 7, %s10
          %s142 = ssub.s32 25, %s141
          %p143 = scmp.lt.s32.totalorder %s142, 7
          %s144 = scalar_select %p143, %s142, 7
          %s145 = smul.u32 64, %s144
        $region28: #{tpu_custom_call.1} parent=23 // pred_fallthru
          _
      $region24: #{tpu_custom_call.1} parent=5 // pred_fallthru
        _
      %p146 = scmp.le.s32.totalorder 1, %s10
      %p147 = scmp.lt.s32.totalorder %s10, 5
      %p148 = pnand %p146, %p147
      %p149 = pneg %p148
      // Predicated region
      $region29: #{tpu_custom_call.1} parent=5 // pred_check
        _
      $region30: #{tpu_custom_call.1} parent=5 // pred_check_branch
        %151 = sbr.rel (%p148) target = $region32
      $region31: #{tpu_custom_call.1} parent=5 // pred_region
        %s152 = ssub.s32 %s10, 1
        %s153 = smul.u32 7, %s15
        %s154 = ssub.s32 25, %s153
        %p155 = scmp.lt.s32.totalorder %s154, 7
        %s156 = scalar_select %p155, %s154, 7
        %s157 = smul.u32 64, %s156
        %p158 = scmp.lt.s32.totalorder %s153, 24
        %s159 = scalar_select %p158, %s153, 24
        %s160 = smul.addr %s159, 4
        %s161 = scalar_lea.vmem %s0, %s160
        %p162 = pneg %p36
        %p163 = pneg %p33
        %p164 = pneg %p57
        %p165 = pneg %p54
        %p166 = pneg %p78
        %p167 = pneg %p75
        %p168 = pneg %p104
        %p169 = pneg %p101
        %s170 = sand.u32 %s91, 1
        %s171 = sand.u32 %s91, 1
        %s172 = smul.addr %s171, 56
        %s173 = scalar_lea.vmem [#allocation3], %s172
        %s174 = smul.u32 7, %s15
        %s175 = ssub.s32 25, %s174
        %p176 = scmp.lt.s32.totalorder %s175, 7
        %s177 = scalar_select %p176, %s175, 7
        %s178 = smul.u32 64, %s177
        %p179 = scmp.lt.s32.totalorder %s174, 24
        %s180 = scalar_select %p179, %s174, 24
        %s181 = smul.addr %s180, 4
        %s182 = scalar_lea.vmem %s0, %s181
        %s183 = smul.u32 7, %s15
        %s184 = ssub.s32 25, %s183
        %p185 = scmp.lt.s32.totalorder %s184, 7
        %s186 = scalar_select %p185, %s184, 7
        %s187 = smul.u32 64, %s186
        %s188 = smul.u32 7, %s15
        %s189 = ssub.s32 25, %s188
        %p190 = scmp.lt.s32.totalorder %s189, 7
        %s191 = scalar_select %p190, %s189, 7
        %s192 = smul.u32 128, %s191
        %v194 = vld [vmem:[%s182] sm:$0xf]
        %v195 = vld [vmem:[%s182 + $0x4] sm:$0xf]
        %v196 = vld [vmem:[%s182 + $0x8] sm:$0xf]
        %v197 = vld [vmem:[%s182 + $0xc] sm:$0xf]
        %v198 = vld [vmem:[%s182 + $0x10] sm:$0xf]
        %v199 = vld [vmem:[%s182 + $0x14] sm:$0xf]
        %v200 = vld [vmem:[%s182 + $0x18] sm:$0xf]
        %v201 = vld [vmem:[%s1] sm:$0xf]
        %v202 = vld [vmem:[%s1 + $0x4] sm:$0xf]
        %v203 = vld [vmem:[%s1 + $0x8] sm:$0xf]
        %v204 = vld [vmem:[%s1 + $0xc] sm:$0xf]
        %v205 = vld [vmem:[%s1 + $0x10] sm:$0xf]
        %v206 = vld [vmem:[%s1 + $0x14] sm:$0xf]
        %v207 = vld [vmem:[%s1 + $0x18] sm:$0xf]
        %v208 = vld [vmem:[%s1 + $0x1c] sm:$0xf]
        %v216 = vunpack.c.l.b16 %v194
        %v217 = vunpack.c.l.b16 %v195
        %v218 = vunpack.c.l.b16 %v196
        %v219 = vunpack.c.l.b16 %v197
        %v220 = vunpack.c.l.b16 %v198
        %v221 = vunpack.c.l.b16 %v199
        %v222 = vunpack.c.l.b16 %v200
        %v223 = vpack.c.b16 %v217, %v216
        %v224 = vpack.c.b16 %v219, %v218
        %v225 = vpack.c.b16 %v221, %v220
        %v226 = vpack.c.b16 %v222, %v222
        %v235 = vunpack.c.l.b16 %v201
        %v236 = vunpack.c.l.b16 %v202
        %v237 = vunpack.c.l.b16 %v203
        %v238 = vunpack.c.l.b16 %v204
        %v239 = vunpack.c.l.b16 %v205
        %v240 = vunpack.c.l.b16 %v206
        %v241 = vunpack.c.l.b16 %v207
        %v242 = vunpack.c.l.b16 %v208
        %v243 = vpack.c.b16 %v236, %v235
        %v244 = vpack.c.b16 %v238, %v237
        %v245 = vpack.c.b16 %v240, %v239
        %v246 = vpack.c.b16 %v242, %v241
        %vm251 = vcmask 523264
        %v253 = vsel %vm251, %v223, 0
        %v256 = vsel %vm251, %v224, 0
        %v259 = vsel %vm251, %v225, 0
        %v262 = vsel %vm251, %v226, 0
        %264 = vmatprep.subr.bf16.mxu0 0
        %265 = vmatpush1.bf16.msra.mxu0 %v243
        %266 = vmatprep.subr.bf16.mxu0 0
        %267 = vmatpush1.bf16.msra.mxu0 %v244
        %268 = vmatprep.subr.bf16.mxu0 0
        %269 = vmatpush1.bf16.msra.mxu0 %v245
        %270 = vmatprep.subr.bf16.mxu0 0
        %271 = vmatpush1.bf16.msra.mxu0 %v246
        %272 = vmatprep.subr.bf16.mxu0 0
        %273 = vmatpush1.bf16.msra.mxu0 0
        %274 = vmatprep.subr.bf16.mxu0 0
        %275 = vmatpush1.bf16.msra.mxu0 0
        %276 = vmatprep.subr.bf16.mxu0 0
        %277 = vmatpush1.bf16.msra.mxu0 0
        %278 = vmatprep.subr.bf16.mxu0 0
        %279 = vmatpush1.bf16.msra.mxu0 0
        %280 = vmatprep.subr.bf16.mxu0 0
        %281 = vmatpush1.bf16.msra.mxu0 0
        %282 = vmatprep.subr.bf16.mxu0 0
        %283 = vmatpush1.bf16.msra.mxu0 0
        %284 = vmatprep.subr.bf16.mxu0 0
        %285 = vmatpush1.bf16.msra.mxu0 0
        %286 = vmatprep.subr.bf16.mxu0 0
        %287 = vmatpush1.bf16.msra.mxu0 0
        %288 = vmatprep.subr.bf16.mxu0 0
        %289 = vmatpush1.bf16.msra.mxu0 0
        %290 = vmatprep.subr.bf16.mxu0 0
        %291 = vmatpush1.bf16.msra.mxu0 0
        %292 = vmatprep.subr.bf16.mxu0 0
        %293 = vmatpush1.bf16.msra.mxu0 0
        %294 = vmatprep.subr.bf16.mxu0 0
        %295 = vmatpush1.bf16.msra.mxu0 0
        %296 = vmatprep.mubr.bf16.mxu0 0
        %297 = vmatmul.mubr.bf16.gmra.mrb[0].mxu0 %v253
        %v298 = vpop.f32.mrb[0].mxu0
        %v299 = vadd.f32 0.0, %v298
        %v300 = vpop.f32.mrb[0].mxu0
        %v301 = vpop.f32.mrb[0].mxu0
        %v302 = vadd.f32 0.0, %v301
        %v303 = vpop.f32.mrb[0].mxu0
        %304 = vmatprep.mubr.bf16.mxu0 0
        %305 = vmatmul.mubr.bf16.gmra.mrb[0].mxu0 %v256
        %v306 = vpop.f32.mrb[0].mxu0
        %v307 = vadd.f32 0.0, %v306
        %v308 = vpop.f32.mrb[0].mxu0
        %v309 = vpop.f32.mrb[0].mxu0
        %v310 = vadd.f32 0.0, %v309
        %v311 = vpop.f32.mrb[0].mxu0
        %312 = vmatprep.mubr.bf16.mxu0 0
        %313 = vmatmul.mubr.bf16.gmra.mrb[0].mxu0 %v259
        %v314 = vpop.f32.mrb[0].mxu0
        %v315 = vadd.f32 0.0, %v314
        %v316 = vpop.f32.mrb[0].mxu0
        %v317 = vpop.f32.mrb[0].mxu0
        %v318 = vadd.f32 0.0, %v317
        %v319 = vpop.f32.mrb[0].mxu0
        %320 = vmatprep.mubr.bf16.mxu0 0
        %321 = vmatmul.mubr.bf16.gmra.mrb[0].mxu0 %v262
        %v322 = vpop.f32.mrb[0].mxu0
        %v323 = vadd.f32 0.0, %v322
        %v324 = vpop.f32.mrb[0].mxu0
        %v325 = vpop.f32.mrb[0].mxu0
        %v326 = vpop.f32.mrb[0].mxu0
        %327 = vdwg.mxu0
        %s328 = sld [smem:[#allocation2]]
        %v329 = vstv %s328
        %v330 = vadd.f32 %v299, %v329
        %v331 = vadd.f32 %v302, %v329
        %v332 = vadd.f32 %v307, %v329
        %v333 = vadd.f32 %v310, %v329
        %v334 = vadd.f32 %v315, %v329
        %v335 = vadd.f32 %v318, %v329
        %v336 = vadd.f32 %v323, %v329
        %vm337 = vcmask 7168
        %338 = vst.msk [vmem:[%s173] sm:$0xff] %vm337, %v330
        %339 = vst.msk [vmem:[%s173 + $0x8] sm:$0xff] %vm337, %v331
        %340 = vst.msk [vmem:[%s173 + $0x10] sm:$0xff] %vm337, %v332
        %341 = vst.msk [vmem:[%s173 + $0x18] sm:$0xff] %vm337, %v333
        %342 = vst.msk [vmem:[%s173 + $0x20] sm:$0xff] %vm337, %v334
        %343 = vst.msk [vmem:[%s173 + $0x28] sm:$0xff] %vm337, %v335
        %344 = vst.msk [vmem:[%s173 + $0x30] sm:$0xff] %vm337, %v336
        %s345 = sand.u32 %s91, 1
        %s346 = sand.u32 %s91, 1
        %s347 = smul.addr %s346, 56
        %s348 = scalar_lea.vmem [#allocation3], %s347
        // Predicated region
        $region33: #{tpu_custom_call.1} parent=31 // pred_check
          %p349 = pneg %p101
        $region34: #{tpu_custom_call.1} parent=31 // pred_check_branch
          %351 = sbr.rel (%p349) target = $region36
        $region35: #{tpu_custom_call.1} parent=31 // pred_region
          %s352 = smul.u32 7, %s15
          %s353 = ssub.s32 25, %s352
          %p354 = scmp.lt.s32.totalorder %s353, 7
          %s355 = scalar_select %p354, %s353, 7
          %s356 = smul.u32 128, %s355
          %p357 = scmp.ne.s32.totalorder 0, %s356
          %s358 = smul.addr %s352, 8
          %s359 = scalar_lea.vmem %s3, %s358
          // Predicated region
          $region37: #{tpu_custom_call.1} parent=35 // pred_check
            %p360 = pneg %p357
          $region38: #{tpu_custom_call.1} parent=35 // pred_check_branch
            %362 = sbr.rel (%p360) target = $region40
          $region39: #{tpu_custom_call.1} parent=35 // pred_region
            // Predicated region
            $region41: #{tpu_custom_call.1} parent=39 // pred_check
              _
            $region42: #{tpu_custom_call.1} parent=39 // pred_check_branch
              %364 = sbr.rel (0) target = $region44
            $region43: #{tpu_custom_call.1} parent=39 // pred_region
              // Predicated region
              $region63: #{tpu_custom_call.1} parent=43 // pred_check
                _
              $region64: #{tpu_custom_call.1} parent=43 // pred_check_branch
                %426 = sbr.rel (0) target = $region66
              $region65: #{tpu_custom_call.1} parent=43 // pred_region
                %s427 = sdiv.u32.pop %s355, 7
                %s428 = srem.u32.pop %s355, 7
                // While loop
                $region67: #{tpu_custom_call.1} parent=65 // loop_pre_header
                  _
                $region68: #{tpu_custom_call.1} parent=65 // loop_header
                  %s430 = sphi 0, %s432
                  %p431 = scmp.ge.s32.totalorder %s430, %s427
                  %s435 = sphi 0, %s454
                  %s436 = sphi %s348, %s457
                  %s437 = sphi %s359, %s458
                $region69: #{tpu_custom_call.1} parent=65 // loop_header_branch
                  %434 = sbr.rel (%p431) target = $region73
                $region70: #{tpu_custom_call.1} parent=65 // loop_body
                  %v438 = vld [vmem:[%s436] sm:$0xff]
                  %439 = vst [vmem:[%s437] sm:$0xff] %v438
                  %v440 = vld [vmem:[%s436 + $0x8] sm:$0xff]
                  %441 = vst [vmem:[%s437 + $0x8] sm:$0xff] %v440
                  %v442 = vld [vmem:[%s436 + $0x10] sm:$0xff]
                  %443 = vst [vmem:[%s437 + $0x10] sm:$0xff] %v442
                  %v444 = vld [vmem:[%s436 + $0x18] sm:$0xff]
                  %445 = vst [vmem:[%s437 + $0x18] sm:$0xff] %v444
                  %v446 = vld [vmem:[%s436 + $0x20] sm:$0xff]
                  %447 = vst [vmem:[%s437 + $0x20] sm:$0xff] %v446
                  %v448 = vld [vmem:[%s436 + $0x28] sm:$0xff]
                  %449 = vst [vmem:[%s437 + $0x28] sm:$0xff] %v448
                  %v450 = vld [vmem:[%s436 + $0x30] sm:$0xff]
                  %451 = vst [vmem:[%s437 + $0x30] sm:$0xff] %v450
                  %s452 = sadd.s32 1, %s435
                  %p453 = scmp.ge.s32.totalorder %s452, %s427
                  %s454 = scalar_select %p453, 0, %s452
                  %s455 = smul.u32 %s454, 56
                  %s456 = smul.u32 %s454, 56
                  %s457 = scalar_lea.vmem %s348, %s455 [#allocation3]
                  %s458 = scalar_lea.vmem %s359, %s456
                $region71: #{tpu_custom_call.1} parent=65 // loop_footer
                  %s432 = sadd.s32 %s430, 1
                $region72: #{tpu_custom_call.1} parent=65 // loop_footer_branch
                  %429 = sbr.rel target = $region68
                $region73: #{tpu_custom_call.1} parent=65 // loop_exit
                  _
                %s459 = sdiv.u32.pop %s355, 7
                %s460 = srem.u32.pop %s355, 7
                %s461 = smul.u32 %s459, 7
                %s462 = smul.u32 8, %s461
                %s463 = scalar_lea.vmem %s348, %s462 [#allocation3]
                %s464 = smul.u32 8, %s461
                %s465 = scalar_lea.vmem %s359, %s464
                // While loop
                $region74: #{tpu_custom_call.1} parent=65 // loop_pre_header
                  _
                $region75: #{tpu_custom_call.1} parent=65 // loop_header
                  %s467 = sphi 0, %s469
                  %p468 = scmp.ge.s32.totalorder %s467, %s460
                  %s472 = sphi 0, %s479
                  %s473 = sphi %s463, %s482
                  %s474 = sphi %s465, %s483
                $region76: #{tpu_custom_call.1} parent=65 // loop_header_branch
                  %471 = sbr.rel (%p468) target = $region80
                $region77: #{tpu_custom_call.1} parent=65 // loop_body
                  %v475 = vld [vmem:[%s473] sm:$0xff]
                  %476 = vst [vmem:[%s474] sm:$0xff] %v475
                  %s477 = sadd.s32 1, %s472
                  %p478 = scmp.ge.s32.totalorder %s477, %s460
                  %s479 = scalar_select %p478, 0, %s477
                  %s480 = smul.u32 %s479, 8
                  %s481 = smul.u32 %s479, 8
                  %s482 = scalar_lea.vmem %s463, %s480 [#allocation3]
                  %s483 = scalar_lea.vmem %s465, %s481
                $region78: #{tpu_custom_call.1} parent=65 // loop_footer
                  %s469 = sadd.s32 %s467, 1
                $region79: #{tpu_custom_call.1} parent=65 // loop_footer_branch
                  %466 = sbr.rel target = $region75
                $region80: #{tpu_custom_call.1} parent=65 // loop_exit
                  _
              $region66: #{tpu_custom_call.1} parent=43 // pred_fallthru
                _
              // Predicated region
              $region81: #{tpu_custom_call.1} parent=43 // pred_check
                _
              $region82: #{tpu_custom_call.1} parent=43 // pred_check_branch
                %485 = sbr.rel target = $region84
              $region83: #{tpu_custom_call.1} parent=43 // pred_region
                _
              $region84: #{tpu_custom_call.1} parent=43 // pred_fallthru
                _
            $region44: #{tpu_custom_call.1} parent=39 // pred_fallthru
              _
            // Predicated region
            $region45: #{tpu_custom_call.1} parent=39 // pred_check
              _
            $region46: #{tpu_custom_call.1} parent=39 // pred_check_branch
              %366 = sbr.rel target = $region48
            $region47: #{tpu_custom_call.1} parent=39 // pred_region
              %s368 = sdiv.u32.pop %s355, 7
              %s369 = srem.u32.pop %s355, 7
              // While loop
              $region49: #{tpu_custom_call.1} parent=47 // loop_pre_header
                _
              $region50: #{tpu_custom_call.1} parent=47 // loop_header
                %s371 = sphi 0, %s373
                %p372 = scmp.ge.s32.totalorder %s371, %s368
                %s376 = sphi 0, %s395
                %s377 = sphi %s348, %s398
                %s378 = sphi %s359, %s399
              $region51: #{tpu_custom_call.1} parent=47 // loop_header_branch
                %375 = sbr.rel (%p372) target = $region55
              $region52: #{tpu_custom_call.1} parent=47 // loop_body
                %v379 = vld [vmem:[%s377] sm:$0xff]
                %380 = vst [vmem:[%s378] sm:$0xff] %v379
                %v381 = vld [vmem:[%s377 + $0x8] sm:$0xff]
                %382 = vst [vmem:[%s378 + $0x8] sm:$0xff] %v381
                %v383 = vld [vmem:[%s377 + $0x10] sm:$0xff]
                %384 = vst [vmem:[%s378 + $0x10] sm:$0xff] %v383
                %v385 = vld [vmem:[%s377 + $0x18] sm:$0xff]
                %386 = vst [vmem:[%s378 + $0x18] sm:$0xff] %v385
                %v387 = vld [vmem:[%s377 + $0x20] sm:$0xff]
                %388 = vst [vmem:[%s378 + $0x20] sm:$0xff] %v387
                %v389 = vld [vmem:[%s377 + $0x28] sm:$0xff]
                %390 = vst [vmem:[%s378 + $0x28] sm:$0xff] %v389
                %v391 = vld [vmem:[%s377 + $0x30] sm:$0xff]
                %392 = vst [vmem:[%s378 + $0x30] sm:$0xff] %v391
                %s393 = sadd.s32 1, %s376
                %p394 = scmp.ge.s32.totalorder %s393, %s368
                %s395 = scalar_select %p394, 0, %s393
                %s396 = smul.u32 %s395, 56
                %s397 = smul.u32 %s395, 56
                %s398 = scalar_lea.vmem %s348, %s396 [#allocation3]
                %s399 = scalar_lea.vmem %s359, %s397
              $region53: #{tpu_custom_call.1} parent=47 // loop_footer
                %s373 = sadd.s32 %s371, 1
              $region54: #{tpu_custom_call.1} parent=47 // loop_footer_branch
                %370 = sbr.rel target = $region50
              $region55: #{tpu_custom_call.1} parent=47 // loop_exit
                _
              %s400 = sdiv.u32.pop %s355, 7
              %s401 = srem.u32.pop %s355, 7
              %s402 = smul.u32 %s400, 7
              %s403 = smul.u32 8, %s402
              %s404 = scalar_lea.vmem %s348, %s403 [#allocation3]
              %s405 = smul.u32 8, %s402
              %s406 = scalar_lea.vmem %s359, %s405
              // While loop
              $region56: #{tpu_custom_call.1} parent=47 // loop_pre_header
                _
              $region57: #{tpu_custom_call.1} parent=47 // loop_header
                %s408 = sphi 0, %s410
                %p409 = scmp.ge.s32.totalorder %s408, %s401
                %s413 = sphi 0, %s420
                %s414 = sphi %s404, %s423
                %s415 = sphi %s406, %s424
              $region58: #{tpu_custom_call.1} parent=47 // loop_header_branch
                %412 = sbr.rel (%p409) target = $region62
              $region59: #{tpu_custom_call.1} parent=47 // loop_body
                %v416 = vld [vmem:[%s414] sm:$0xff]
                %417 = vst [vmem:[%s415] sm:$0xff] %v416
                %s418 = sadd.s32 1, %s413
                %p419 = scmp.ge.s32.totalorder %s418, %s401
                %s420 = scalar_select %p419, 0, %s418
                %s421 = smul.u32 %s420, 8
                %s422 = smul.u32 %s420, 8
                %s423 = scalar_lea.vmem %s404, %s421 [#allocation3]
                %s424 = scalar_lea.vmem %s406, %s422
              $region60: #{tpu_custom_call.1} parent=47 // loop_footer
                %s410 = sadd.s32 %s408, 1
              $region61: #{tpu_custom_call.1} parent=47 // loop_footer_branch
                %407 = sbr.rel target = $region57
              $region62: #{tpu_custom_call.1} parent=47 // loop_exit
                _
            $region48: #{tpu_custom_call.1} parent=39 // pred_fallthru
              _
          $region40: #{tpu_custom_call.1} parent=35 // pred_fallthru
            _
          %486 = vnop
        $region36: #{tpu_custom_call.1} parent=31 // pred_fallthru
          _
      $region32: #{tpu_custom_call.1} parent=5 // pred_fallthru
        _
      %p487 = scmp.le.s32.totalorder 2, %s10
      // Predicated region
      $region85: #{tpu_custom_call.1} parent=5 // pred_check
        %p488 = pneg %p487
      $region86: #{tpu_custom_call.1} parent=5 // pred_check_branch
        %490 = sbr.rel (%p488) target = $region88
      $region87: #{tpu_custom_call.1} parent=5 // pred_region
        %s491 = ssub.s32 %s10, 2
        // Predicated region
        $region89: #{tpu_custom_call.1} parent=87 // pred_check
          %p492 = pneg %p107
        $region90: #{tpu_custom_call.1} parent=87 // pred_check_branch
          %494 = sbr.rel (%p492) target = $region92
        $region91: #{tpu_custom_call.1} parent=87 // pred_region
          %s495 = sand.u32 %s92, 1
          %s496 = sand.u32 %s92, 1
          %s497 = smul.addr %s496, 56
          %s498 = scalar_lea.vmem [#allocation3], %s497
        $region92: #{tpu_custom_call.1} parent=87 // pred_fallthru
          _
      $region88: #{tpu_custom_call.1} parent=5 // pred_fallthru
        _
    $region6: #{tpu_custom_call.1} parent=1 // loop_footer
      %s14 = sadd.s32 1, %s10
    $region7: #{tpu_custom_call.1} parent=1 // loop_footer_branch
      %9 = sbr.rel target = $region3
    $region8: #{tpu_custom_call.1} parent=1 // loop_exit
      _

</llo_original>
